<compile_context>
chip_gen: v6e
topology: v6e:2x2x1
jax: 0.10.0
libtpu: 0.0.40
codegen_flags: <defaults>
</compile_context>

<pallas_src>
import functools

import jax
import jax.numpy as jnp
from jax.experimental import pallas as pl
from jax.experimental.pallas import tpu as pltpu

_MIB = 1024 * 1024


# ---------------------------------------------------------------------------
# Hardware queries (guarded: fall back to the most conservative modern values)
# ---------------------------------------------------------------------------
def _vmem_capacity_bytes():
    try:
        return int(pltpu.get_tpu_info().vmem_capacity_bytes)
    except Exception:
        return 64 * _MIB                      # v7x-sized conservative fallback


def _tensorcores_per_chip():
    try:
        info = pltpu.get_tpu_info()
        for name in ("num_cores", "core_count", "num_tensorcores"):
            v = getattr(info, name, None)
            if v:
                return int(v)
    except Exception:
        pass
    try:
        d = jax.devices()[0]
        for name in ("num_cores", "core_count"):
            v = getattr(d, name, None)
            if v:
                return int(v)
    except Exception:
        pass
    return 1                                  # v5e/v6e: 1 TC per chip


# ---------------------------------------------------------------------------
# Shared: fused avg/max MLP -> sigmoid -> sum, as one (C,2) RHS pass.
# ---------------------------------------------------------------------------
def _fused_mlp_scale(avg, mx, w1, w2):
    """avg, mx: (C,1) f32.  Returns (C,1) f32 = sig(mlp(avg)) + sig(mlp(max))."""
    c = avg.shape[0]
    col = jax.lax.broadcasted_iota(jnp.int32, (c, 2), 1)
    pooled = jnp.where(col == 0, avg, mx)                                   # (C, 2)
    h = jnp.dot(w1, pooled, preferred_element_type=jnp.float32)             # (Cr, 2)
    h = jnp.maximum(h, 0.0)                                                 # ReLU
    s = jnp.dot(w2, h, preferred_element_type=jnp.float32)                  # (C, 2)
    sig = jax.nn.sigmoid(s)                                                 # EUP
    return jnp.sum(sig, axis=-1, keepdims=True)                             # (C, 1)


# ---------------------------------------------------------------------------
# Path 1: single-pass (whole (C, HW) slab per batch element) — 1 read + 1 write.
# ---------------------------------------------------------------------------
def _ca_fused_kernel(x_ref, w1_ref, w2_ref, o_ref):
    x = x_ref[...]                                   # native dtype, no f32 slab copy
    hw = x.shape[-1]

    ssum = jnp.sum(x, axis=-1, keepdims=True, dtype=jnp.float32)            # (C, 1)
    avg = ssum * (1.0 / hw)
    mx = jnp.max(x, axis=-1, keepdims=True).astype(jnp.float32)             # (C, 1)

    scale = _fused_mlp_scale(avg, mx,
                             w1_ref[...].astype(jnp.float32),
                             w2_ref[...].astype(jnp.float32))               # (C, 1)

    # Re-read the slab from VMEM for the broadcast multiply instead of keeping
    # `x` live across the MLP section (spill hygiene for large slabs).
    o_ref[...] = (x_ref[...] * scale.astype(o_ref.dtype)).astype(o_ref.dtype)


# ---------------------------------------------------------------------------
# Path 2a: tiled reduction pass — sum/max over HW tiles, fused MLP at last tile.
# ---------------------------------------------------------------------------
def _ca_reduce_kernel(x_ref, w1_ref, w2_ref, scale_ref, sum_acc, max_acc, *,
                      hw, tile):
    t = pl.program_id(1)
    nt = pl.num_programs(1)

    @pl.when(t == 0)
    def _():
        sum_acc[...] = jnp.zeros_like(sum_acc)
        max_acc[...] = jnp.full_like(max_acc, -jnp.inf)

    x = x_ref[...]                                   # (C, tile) native dtype

    if hw % tile != 0:
        # Ragged HW: masking runs ONLY on the final tile (pl.when); every other
        # tile takes the plain unmasked accumulate below.
        @pl.when(t < nt - 1)
        def _():
            sum_acc[...] += jnp.sum(x, axis=-1, keepdims=True, dtype=jnp.float32)
            max_acc[...] = jnp.maximum(
                max_acc[...], jnp.max(x, axis=-1, keepdims=True).astype(jnp.float32))

        @pl.when(t == nt - 1)
        def _():
            lane = jax.lax.broadcasted_iota(jnp.int32, x.shape, 1)
            valid = (t * tile + lane) < hw
            xs = jnp.where(valid, x, jnp.zeros_like(x))
            xm = jnp.where(valid, x, jnp.full_like(x, -jnp.inf))
            sum_acc[...] += jnp.sum(xs, axis=-1, keepdims=True, dtype=jnp.float32)
            max_acc[...] = jnp.maximum(
                max_acc[...], jnp.max(xm, axis=-1, keepdims=True).astype(jnp.float32))
    else:
        sum_acc[...] += jnp.sum(x, axis=-1, keepdims=True, dtype=jnp.float32)
        max_acc[...] = jnp.maximum(
            max_acc[...], jnp.max(x, axis=-1, keepdims=True).astype(jnp.float32))

    @pl.when(t == nt - 1)
    def _():
        avg = sum_acc[...] * (1.0 / hw)              # divide by REAL hw, not padded
        scale_ref[...] = _fused_mlp_scale(avg, max_acc[...],
                                          w1_ref[...].astype(jnp.float32),
                                          w2_ref[...].astype(jnp.float32))


# ---------------------------------------------------------------------------
# Path 2b: tiled scale-multiply pass — embarrassingly parallel over (B, HW//T).
# ---------------------------------------------------------------------------
def _ca_scale_kernel(x_ref, s_ref, o_ref):
    x = x_ref[...]                                   # (C, T) native dtype
    o_ref[...] = (x * s_ref[...].astype(x.dtype)).astype(o_ref.dtype)


# ---------------------------------------------------------------------------
# Tile picker: bytes-based, lane-dense, divisor-preferring.
# ---------------------------------------------------------------------------
def _pick_hw_tile(hw, c, itemsize, vmem_limit, hw_tile=None):
    if hw <= 128:
        return hw                                    # full last dim (always legal)
    if hw_tile is not None:
        t = min(int(hw_tile), hw)
        return max(128, (t // 128) * 128)
    row_bytes = c * itemsize
    target_bytes = 4 * _MIB                          # ~85%+ of HBM roofline per block
    t_target = max(128, ((target_bytes // row_bytes) // 128) * 128)
    t_vmem = max(128, ((vmem_limit // (4 * row_bytes)) // 128) * 128)  # in+out x2 buf
    t = int(min(hw, t_target, t_vmem))
    t = max(128, (t // 128) * 128)
    # Prefer a nearby 128-multiple that divides HW (no ragged tile -> no masking).
    cand = t
    while cand >= max(128, t // 2):
        if hw % cand == 0:
            return cand
        cand -= 128
    return t


def channel_attention(x, w1, w2, *, hw_tile=None, single_pass_vmem_bytes=None,
                      force_tiled=False):
    """x: (B, C, H, W) NCHW.
    w1: (C//r, C)  weight of nn.Linear(C, C//r, bias=False)
    w2: (C, C//r)  weight of nn.Linear(C//r, C, bias=False)
    Returns (B, C, H, W) = x * (sigmoid(fc(avgpool)) + sigmoid(fc(maxpool))).
    """
    B, C, H, W = x.shape
    HW = H * W
    Cr = w1.shape[0]
    x_flat = x.reshape(B, C, HW)

    itemsize = x.dtype.itemsize
    slab_bytes = C * HW * itemsize
    w_bytes = (w1.size * w1.dtype.itemsize + w2.size * w2.dtype.itemsize)
    mlp_flops = 8 * C * Cr

    # Generation-aware VMEM budget (raises the default scoped limit everywhere,
    # stays under v7x's 64 MiB physical).
    vmem_cap = _vmem_capacity_bytes()
    vmem_limit = min((vmem_cap * 3) // 4, 100 * _MIB)    # 128MiB->96MiB, 64MiB->48MiB
    budget = vmem_limit if single_pass_vmem_bytes is None else int(single_pass_vmem_bytes)

    T = _pick_hw_tile(HW, C, itemsize, vmem_limit, hw_tile)
    nT = pl.cdiv(HW, T)

    # Megacore (v7x, 2 TCs/chip): at tiny batch the grid=(B,) single-pass call
    # runs on one core; prefer the tiled path so the scale pass shards.
    cores = _tensorcores_per_chip()
    prefer_tiled_megacore = (cores >= 2) and (B < cores) and (nT >= 2)

    # Single-pass footprint per grid step ~= double-buffered in + out (4x slab)
    # plus resident weights.
    single_pass = (not force_tiled) and (not prefer_tiled_megacore) and \
        (4 * slab_bytes + 2 * w_bytes) <= budget

    if single_pass:
        cost = pl.CostEstimate(
            flops=int(B * (3 * C * HW + mlp_flops)),
            transcendentals=int(2 * B * C),
            bytes_accessed=int(2 * B * slab_bytes + w_bytes),
        )
        out_flat = pl.pallas_call(
            _ca_fused_kernel,
            out_shape=jax.ShapeDtypeStruct((B, C, HW), x.dtype),
            grid_spec=pltpu.PrefetchScalarGridSpec(
                num_scalar_prefetch=0,
                grid=(B,),
                in_specs=[
                    pl.BlockSpec((pl.Squeezed(), C, HW), lambda b: (b, 0, 0)),
                    # constant block index -> weights DMA'd once, stay resident
                    pl.BlockSpec((Cr, C), lambda b: (0, 0)),
                    pl.BlockSpec((C, Cr), lambda b: (0, 0)),
                ],
                out_specs=pl.BlockSpec((pl.Squeezed(), C, HW),
                                       lambda b: (b, 0, 0)),
            ),
            compiler_params=pltpu.CompilerParams(
                dimension_semantics=("parallel",),
                vmem_limit_bytes=int(vmem_limit)),
            cost_estimate=cost,
        )(x_flat, w1, w2)
        return out_flat.reshape(B, C, H, W)

    # ----- tiled two-pass path (large HW / tight VMEM / megacore small-B) -----
    reduce_cost = pl.CostEstimate(
        flops=int(B * (2 * C * HW + mlp_flops)),
        transcendentals=int(2 * B * C),
        bytes_accessed=int(B * slab_bytes + w_bytes + B * C * 4),
    )
    scale = pl.pallas_call(
        functools.partial(_ca_reduce_kernel, hw=HW, tile=T),
        out_shape=jax.ShapeDtypeStruct((B, C, 1), jnp.float32),
        grid_spec=pltpu.PrefetchScalarGridSpec(
            num_scalar_prefetch=0,
            grid=(B, nT),
            in_specs=[
                pl.BlockSpec((pl.Squeezed(), C, T), lambda b, t: (b, 0, t)),
                pl.BlockSpec((Cr, C), lambda b, t: (0, 0)),
                pl.BlockSpec((C, Cr), lambda b, t: (0, 0)),
            ],
            out_specs=pl.BlockSpec((pl.Squeezed(), C, 1),
                                   lambda b, t: (b, 0, 0)),
            scratch_shapes=[pltpu.VMEM((C, 1), jnp.float32),
                            pltpu.VMEM((C, 1), jnp.float32)],
        ),
        compiler_params=pltpu.CompilerParams(
            dimension_semantics=("parallel", "arbitrary"),
            vmem_limit_bytes=int(vmem_limit)),
        cost_estimate=reduce_cost,
    )(x_flat, w1, w2)

    scale_cost = pl.CostEstimate(
        flops=int(B * C * HW),
        transcendentals=0,
        bytes_accessed=int(2 * B * slab_bytes + B * C * 4),
    )
    out_flat = pl.pallas_call(
        _ca_scale_kernel,
        out_shape=jax.ShapeDtypeStruct((B, C, HW), x.dtype),
        grid_spec=pltpu.PrefetchScalarGridSpec(
            num_scalar_prefetch=0,
            grid=(B, nT),
            in_specs=[
                pl.BlockSpec((pl.Squeezed(), C, T), lambda b, t: (b, 0, t)),
                pl.BlockSpec((pl.Squeezed(), C, 1), lambda b, t: (b, 0, 0)),
            ],
            out_specs=pl.BlockSpec((pl.Squeezed(), C, T),
                                   lambda b, t: (b, 0, t)),
        ),
        compiler_params=pltpu.CompilerParams(
            dimension_semantics=("parallel", "parallel"),
            vmem_limit_bytes=int(vmem_limit)),
        cost_estimate=scale_cost,
    )(x_flat, scale)
    return out_flat.reshape(B, C, H, W)


def channel_attention_ref(x, w1, w2):
    # pure-JAX reference mirroring the PyTorch forward
    B, C, H, W = x.shape
    avg = jnp.mean(x, axis=(2, 3))                   # (B, C)
    mxp = jnp.max(x.reshape(B, C, -1), axis=-1)      # (B, C)

    def fc(p):
        h = jnp.maximum(p @ w1.T, 0.0)
        return jax.nn.sigmoid(h @ w2.T)

    out = fc(avg) + fc(mxp)                          # (B, C)
    return x * out[:, :, None, None]


if __name__ == "__main__":
    key = jax.random.PRNGKey(0)
    kx, k1, k2, kx2, k3, k4, kx3 = jax.random.split(key, 7)

    # Test 1: small shapes -> single-pass (whole-slab) path.
    B, C, H, W = 2, 32, 8, 8
    reduction = 16
    Cr = C // reduction
    x = jax.random.normal(kx, (B, C, H, W), dtype=jnp.float32)
    w1 = jax.random.normal(k1, (Cr, C), dtype=jnp.float32) * 0.1
    w2 = jax.random.normal(k2, (C, Cr), dtype=jnp.float32) * 0.1

    out = jax.block_until_ready(channel_attention(x, w1, w2))
    ref = channel_attention_ref(x, w1, w2)
    assert out.shape == (B, C, H, W)
    assert jnp.allclose(out, ref, atol=1e-5, rtol=1e-5), "single-pass mismatch"

    # Test 2: forced tiled two-pass path, HW a multiple of the tile (no ragged).
    B2, C2, H2, W2 = 2, 16, 16, 16                   # HW = 256, tiled at 128 lanes
    Cr2 = 4
    x2 = jax.random.normal(kx2, (B2, C2, H2, W2), dtype=jnp.float32)
    w1b = jax.random.normal(k3, (Cr2, C2), dtype=jnp.float32) * 0.1
    w2b = jax.random.normal(k4, (C2, Cr2), dtype=jnp.float32) * 0.1

    out2 = jax.block_until_ready(
        channel_attention(x2, w1b, w2b, hw_tile=128, force_tiled=True))
    ref2 = channel_attention_ref(x2, w1b, w2b)
    assert out2.shape == (B2, C2, H2, W2)
    assert jnp.allclose(out2, ref2, atol=1e-5, rtol=1e-5), "tiled mismatch"

    # Test 3: forced tiled path with a ragged last tile (HW = 169, T = 128),
    # exercising the pl.when-gated masked accumulate.
    B3, C3, H3, W3 = 2, 16, 13, 13
    x3 = jax.random.normal(kx3, (B3, C3, H3, W3), dtype=jnp.float32)
    out3 = jax.block_until_ready(
        channel_attention(x3, w1b, w2b, hw_tile=128, force_tiled=True))
    ref3 = channel_attention_ref(x3, w1b, w2b)
    assert out3.shape == (B3, C3, H3, W3)
    assert jnp.allclose(out3, ref3, atol=1e-5, rtol=1e-5), "ragged tiled mismatch"

    print("KERNEL_OK")
</pallas_src>

<mosaic_0001>
module attributes {stable_mosaic.version = 11 : i64} {
  func.func @_ca_fused_kernel(%arg0: i32, %arg1: memref<1x32x64xf32, #tpu.memory_space<vmem>>, %arg2: memref<2x32xf32, #tpu.memory_space<vmem>>, %arg3: memref<32x2xf32, #tpu.memory_space<vmem>>, %arg4: memref<1x32x64xf32, #tpu.memory_space<vmem>>) attributes {dimension_semantics = [#tpu.dimension_semantics<parallel>], iteration_bounds = array<i64: 2>, scalar_prefetch = 0 : i64, scratch_operands = 0 : i64, tpu.core_type = #tpu.core_type<tc>, window_params = [{transform_indices = @transform_0, window_bounds = array<i64: 1, 32, 64>}, {pipeline_mode = #tpu.pipeline_mode<synchronous>, transform_indices = @transform_1, window_bounds = array<i64: 2, 32>}, {pipeline_mode = #tpu.pipeline_mode<synchronous>, transform_indices = @transform_2, window_bounds = array<i64: 32, 2>}, {transform_indices = @transform_3, window_bounds = array<i64: 1, 32, 64>}]} {
    %c0 = arith.constant 0 : index
    %c0_0 = arith.constant 0 : index
    %c0_1 = arith.constant 0 : index
    %0 = vector.load %arg1[%c0, %c0_0, %c0_1] : memref<1x32x64xf32, #tpu.memory_space<vmem>>, vector<1x32x64xf32>
    %1 = vector.shape_cast %0 : vector<1x32x64xf32> to vector<32x64xf32>
    %cst = arith.constant dense<0.000000e+00> : vector<32xf32>
    %2 = vector.multi_reduction <add>, %1, %cst [1] : vector<32x64xf32> to vector<32xf32>
    %3 = vector.shape_cast %2 : vector<32xf32> to vector<32x1xf32>
    %cst_2 = arith.constant 1.562500e-02 : f32
    %4 = vector.broadcast %cst_2 : f32 to vector<32x1xf32>
    %5 = arith.mulf %3, %4 : vector<32x1xf32>
    %cst_3 = arith.constant dense<0xFF800000> : vector<32xf32>
    %6 = vector.multi_reduction <maximumf>, %1, %cst_3 [1] : vector<32x64xf32> to vector<32xf32>
    %7 = vector.shape_cast %6 : vector<32xf32> to vector<32x1xf32>
    %c0_4 = arith.constant 0 : index
    %c0_5 = arith.constant 0 : index
    %8 = vector.load %arg2[%c0_4, %c0_5] : memref<2x32xf32, #tpu.memory_space<vmem>>, vector<2x32xf32>
    %c0_6 = arith.constant 0 : index
    %c0_7 = arith.constant 0 : index
    %9 = vector.load %arg3[%c0_6, %c0_7] : memref<32x2xf32, #tpu.memory_space<vmem>>, vector<32x2xf32>
    %10 = tpu.iota {dimensions = array<i32: 1>} : vector<32x2xi32>
    %c0_i32 = arith.constant 0 : i32
    %11 = vector.broadcast %c0_i32 : i32 to vector<32x2xi32>
    %12 = arith.cmpi eq, %10, %11 : vector<32x2xi32>
    %13 = vector.shape_cast %5 : vector<32x1xf32> to vector<32x1xf32>
    %14 = vector.broadcast %13 : vector<32x1xf32> to vector<32x2xf32>
    %15 = vector.shape_cast %7 : vector<32x1xf32> to vector<32x1xf32>
    %16 = vector.broadcast %15 : vector<32x1xf32> to vector<32x2xf32>
    %17 = arith.select %12, %14, %16 : vector<32x2xi1>, vector<32x2xf32>
    %cst_8 = arith.constant dense<0.000000e+00> : vector<2x2xf32>
    %18 = tpu.matmul %8, %17, %cst_8 {dimension_numbers = #tpu.dot_dimension_numbers<[1], [0], [0], [1], [0, 0, 1, 1], [], []>} : vector<2x32xf32>, vector<32x2xf32>, vector<2x2xf32> -> vector<2x2xf32>
    %cst_9 = arith.constant 0.000000e+00 : f32
    %19 = vector.broadcast %cst_9 : f32 to vector<2x2xf32>
    %20 = arith.maximumf %18, %19 : vector<2x2xf32>
    %cst_10 = arith.constant dense<0.000000e+00> : vector<32x2xf32>
    %21 = tpu.matmul %9, %20, %cst_10 {dimension_numbers = #tpu.dot_dimension_numbers<[1], [0], [0], [1], [0, 0, 1, 1], [], []>} : vector<32x2xf32>, vector<2x2xf32>, vector<32x2xf32> -> vector<32x2xf32>
    %22 = arith.negf %21 : vector<32x2xf32>
    %23 = math.exp %22 : vector<32x2xf32>
    %cst_11 = arith.constant 1.000000e+00 : f32
    %24 = vector.broadcast %cst_11 : f32 to vector<32x2xf32>
    %25 = arith.addf %24, %23 : vector<32x2xf32>
    %26 = arith.divf %24, %25 : vector<32x2xf32>
    %cst_12 = arith.constant dense<0.000000e+00> : vector<32xf32>
    %27 = vector.multi_reduction <add>, %26, %cst_12 [1] : vector<32x2xf32> to vector<32xf32>
    %28 = vector.shape_cast %27 : vector<32xf32> to vector<32x1xf32>
    %c0_13 = arith.constant 0 : index
    %c0_14 = arith.constant 0 : index
    %c0_15 = arith.constant 0 : index
    %29 = vector.load %arg1[%c0_13, %c0_14, %c0_15] : memref<1x32x64xf32, #tpu.memory_space<vmem>>, vector<1x32x64xf32>
    %30 = vector.shape_cast %29 : vector<1x32x64xf32> to vector<32x64xf32>
    %31 = vector.broadcast %28 : vector<32x1xf32> to vector<32x64xf32>
    %32 = arith.mulf %30, %31 : vector<32x64xf32>
    %c0_16 = arith.constant 0 : index
    %c0_17 = arith.constant 0 : index
    %c0_18 = arith.constant 0 : index
    %33 = vector.load %arg4[%c0_16, %c0_17, %c0_18] : memref<1x32x64xf32, #tpu.memory_space<vmem>>, vector<1x32x64xf32>
    %34 = vector.shape_cast %33 : vector<1x32x64xf32> to vector<32x64xf32>
    %35 = vector.shape_cast %32 : vector<32x64xf32> to vector<1x32x64xf32>
    tpu.vector_store %arg4[%c0_16, %c0_17, %c0_18], %35 {strides = array<i32>} : memref<1x32x64xf32, #tpu.memory_space<vmem>>, vector<1x32x64xf32>,
    return
  }
  func.func @transform_0(%arg0: i32) -> (i32, i32, i32) {
    %c0_i32 = arith.constant 0 : i32
    %c0_i32_0 = arith.constant 0 : i32
    %c0_i32_1 = arith.constant 0 : i32
    return %arg0, %c0_i32, %c0_i32_0 : i32, i32, i32
  }
  func.func @transform_1(%arg0: i32) -> (i32, i32) {
    %c0_i32 = arith.constant 0 : i32
    %c0_i32_0 = arith.constant 0 : i32
    %c0_i32_1 = arith.constant 0 : i32
    return %c0_i32, %c0_i32_0 : i32, i32
  }
  func.func @transform_2(%arg0: i32) -> (i32, i32) {
    %c0_i32 = arith.constant 0 : i32
    %c0_i32_0 = arith.constant 0 : i32
    %c0_i32_1 = arith.constant 0 : i32
    return %c0_i32, %c0_i32_0 : i32, i32
  }
  func.func @transform_3(%arg0: i32) -> (i32, i32, i32) {
    %c0_i32 = arith.constant 0 : i32
    %c0_i32_0 = arith.constant 0 : i32
    %c0_i32_1 = arith.constant 0 : i32
    return %arg0, %c0_i32, %c0_i32_0 : i32, i32, i32
  }
}

</mosaic_0001>

<llo_original>
// kernel: tpu_custom_call.1
$region0: #{tpu_custom_call.1}
  #allocation0 [shape = 'u32[]', space=smem, size = 0x4, offset = 0x4, fixed_abs, tag = 'smem constant byte address 0x4 - core index']
  #allocation1 [shape = 'u32[144,128]{1,0:T(1,128)}', space=vmem, size = 0x12000, scoped, tag = 'internal scratch']
  %s0 = inlined_call_operand.hbm [shape: f32[2,32,64], index: 0, kind: input, shape index: {}]
  %s1 = inlined_call_operand.vmem [shape: f32[2,32], index: 1, kind: input, shape index: {}]
  %s2 = inlined_call_operand.vmem [shape: f32[32,2], index: 2, kind: input, shape index: {}]
  %s3 = inlined_call_operand.hbm [shape: f32[2,32,64], index: 3, kind: output, shape index: {}]
  %s4 = sld [smem:[#allocation0]]
  $region49: #{tpu_custom_call.1} parent=0
    _
  %s6 = ssub.s32 1, %s4
  %s7 = scalar_select 0, %s6, %s4
  $region1: #{tpu_custom_call.1} parent=0
    #allocation2 [shape = 'u8[32768]{0}', space=vmem, size = 0x8000, scoped, tag = 'input window, operand 0']
    #allocation3 [shape = 's32[2]{0}', space=sflag, size = 0x8, scoped, tag = 'scoped memory for tpu_custom_call.1']
    #allocation4 [shape = 's32[2]{0}', space=sflag, size = 0x8, scoped, tag = 'scoped memory for tpu_custom_call.1']
    #allocation5 [shape = 'u8[32768]{0}', space=vmem, size = 0x8000, scoped, tag = 'output window, operand 0']
    %8 = vsyncpa [#allocation3], 0
    %s9 = scalar_lea.sflag [#allocation3], 1
    %10 = vsyncpa %s9, 0
    %11 = vsyncpa [#allocation4], 0
    %s12 = scalar_lea.sflag [#allocation4], 1
    %13 = vsyncpa %s12, 0
    loop: start=0, step=1, limit=4
    $region2: #{tpu_custom_call.1} parent=1 // loop_pre_header
      _
    $region3: #{tpu_custom_call.1} parent=1 // loop_header
      %s15 = sphi 0, %s19
      %p16 = scmp.ge.s32.totalorder %s15, 4
      %s25 = sphi 0, %s27
      %s28 = sphi 0, %s25
      %s29 = sphi 0, %s28
      %s45 = sphi 0, %s29
      %s49 = sphi 0, %s49
      %s51 = sphi 0, %s49
      %s52 = sphi 0, %s51
      %s66 = sphi 0, %s52
      %s70 = sphi 0, %s70
      %s72 = sphi 0, %s70
      %s73 = sphi 0, %s72
      %s87 = sphi 0, %s73
      %s93 = sphi 0, %s95
      %s96 = sphi 0, %s93
      %s97 = sphi 0, %s96
      %s113 = sphi 0, %s97
    $region4: #{tpu_custom_call.1} parent=1 // loop_header_branch
      %18 = sbr.rel (%p16) target = $region8
    $region5: #{tpu_custom_call.1} parent=1 // loop_body
      %s20 = ssub.s32 %s15, 1
      %s21 = ssub.s32 %s15, 2
      %s22 = sadd.s32 %s15, 1
      %s23 = ssub.s32 %s15, %s22
      %p24 = scmp.eq.s32.totalorder %s23, 0
      %s26 = sadd.s32 %s25, 1
      %s27 = scalar_select %p24, %s25, %s26
      %p30 = pneg %p24
      %p31 = scmp.eq.s32.totalorder %s15, 1
      %p32 = por %p30, %p31
      %p33 = scmp.ne.s32.totalorder %s25, %s28
      %p34 = scmp.eq.s32.totalorder %s15, 0
      %p35 = por %p33, %p34
      %p36 = scmp.ne.s32.totalorder %s25, %s28
      %p37 = scmp.eq.s32.totalorder %s20, 1
      %p38 = por %p36, %p37
      %p39 = scmp.ne.s32.totalorder %s28, %s29
      %p40 = scmp.eq.s32.totalorder %s20, 0
      %p41 = por %p39, %p40
      %p42 = scmp.ne.s32.totalorder %s28, %s29
      %p43 = scmp.eq.s32.totalorder %s21, 1
      %p44 = por %p42, %p43
      %p46 = scmp.ne.s32.totalorder %s29, %s45
      %p47 = scmp.eq.s32.totalorder %s21, 0
      %p48 = por %p46, %p47
      %s50 = sadd.s32 %s49, 1
      %p53 = scmp.eq.s32.totalorder %s15, 1
      %p54 = scmp.ne.s32.totalorder %s49, %s51
      %p55 = scmp.eq.s32.totalorder %s15, 0
      %p56 = por %p54, %p55
      %p57 = scmp.ne.s32.totalorder %s49, %s51
      %p58 = scmp.eq.s32.totalorder %s20, 1
      %p59 = por %p57, %p58
      %p60 = scmp.ne.s32.totalorder %s51, %s52
      %p61 = scmp.eq.s32.totalorder %s20, 0
      %p62 = por %p60, %p61
      %p63 = scmp.ne.s32.totalorder %s51, %s52
      %p64 = scmp.eq.s32.totalorder %s21, 1
      %p65 = por %p63, %p64
      %p67 = scmp.ne.s32.totalorder %s52, %s66
      %p68 = scmp.eq.s32.totalorder %s21, 0
      %p69 = por %p67, %p68
      %s71 = sadd.s32 %s70, 1
      %p74 = scmp.eq.s32.totalorder %s15, 1
      %p75 = scmp.ne.s32.totalorder %s70, %s72
      %p76 = scmp.eq.s32.totalorder %s15, 0
      %p77 = por %p75, %p76
      %p78 = scmp.ne.s32.totalorder %s70, %s72
      %p79 = scmp.eq.s32.totalorder %s20, 1
      %p80 = por %p78, %p79
      %p81 = scmp.ne.s32.totalorder %s72, %s73
      %p82 = scmp.eq.s32.totalorder %s20, 0
      %p83 = por %p81, %p82
      %p84 = scmp.ne.s32.totalorder %s72, %s73
      %p85 = scmp.eq.s32.totalorder %s21, 1
      %p86 = por %p84, %p85
      %p88 = scmp.ne.s32.totalorder %s73, %s87
      %p89 = scmp.eq.s32.totalorder %s21, 0
      %p90 = por %p88, %p89
      %s91 = ssub.s32 %s15, %s22
      %p92 = scmp.eq.s32.totalorder %s91, 0
      %s94 = sadd.s32 %s93, 1
      %s95 = scalar_select %p92, %s93, %s94
      %p98 = pneg %p92
      %p99 = scmp.eq.s32.totalorder %s15, 1
      %p100 = por %p98, %p99
      %p101 = scmp.ne.s32.totalorder %s93, %s96
      %p102 = scmp.eq.s32.totalorder %s15, 0
      %p103 = por %p101, %p102
      %p104 = scmp.ne.s32.totalorder %s93, %s96
      %p105 = scmp.eq.s32.totalorder %s20, 1
      %p106 = por %p104, %p105
      %p107 = scmp.ne.s32.totalorder %s96, %s97
      %p108 = scmp.eq.s32.totalorder %s20, 0
      %p109 = por %p107, %p108
      %p110 = scmp.ne.s32.totalorder %s96, %s97
      %p111 = scmp.eq.s32.totalorder %s21, 1
      %p112 = por %p110, %p111
      %p114 = scmp.ne.s32.totalorder %s97, %s113
      %p115 = scmp.eq.s32.totalorder %s21, 0
      %p116 = por %p114, %p115
      %p117 = scmp.le.s32.totalorder 1, %s15
      %p118 = scmp.lt.s32.totalorder %s15, 3
      %p119 = pnand %p117, %p118
      %p120 = pneg %p119
      // Predicated region
      $region9: #{tpu_custom_call.1} parent=5 // pred_check
        _
      $region10: #{tpu_custom_call.1} parent=5 // pred_check_branch
        %122 = sbr.rel (%p119) target = $region12
      $region11: #{tpu_custom_call.1} parent=5 // pred_region
        %s123 = ssub.s32 %s15, 1
        // Predicated region
        $region13: #{tpu_custom_call.1} parent=11 // pred_check
          %p124 = pneg %p62
        $region14: #{tpu_custom_call.1} parent=11 // pred_check_branch
          %126 = sbr.rel (%p124) target = $region16
        $region15: #{tpu_custom_call.1} parent=11 // pred_region
          _
        $region16: #{tpu_custom_call.1} parent=11 // pred_fallthru
          _
        // Predicated region
        $region17: #{tpu_custom_call.1} parent=11 // pred_check
          %p127 = pneg %p83
        $region18: #{tpu_custom_call.1} parent=11 // pred_check_branch
          %129 = sbr.rel (%p127) target = $region20
        $region19: #{tpu_custom_call.1} parent=11 // pred_region
          _
        $region20: #{tpu_custom_call.1} parent=11 // pred_fallthru
          _
      $region12: #{tpu_custom_call.1} parent=5 // pred_fallthru
        _
      %p130 = scmp.lt.s32.totalorder %s15, 2
      // Predicated region
      $region21: #{tpu_custom_call.1} parent=5 // pred_check
        %p131 = pneg %p130
      $region22: #{tpu_custom_call.1} parent=5 // pred_check_branch
        %133 = sbr.rel (%p131) target = $region24
      $region23: #{tpu_custom_call.1} parent=5 // pred_region
        // Predicated region
        $region25: #{tpu_custom_call.1} parent=23 // pred_check
          %p134 = pneg %p35
        $region26: #{tpu_custom_call.1} parent=23 // pred_check_branch
          %136 = sbr.rel (%p134) target = $region28
        $region27: #{tpu_custom_call.1} parent=23 // pred_region
          %s137 = sand.u32 %s25, 1
          %s138 = scalar_lea.sflag [#allocation3], %s137
          %s139 = sand.u32 %s25, 1
          %s140 = smul.addr %s139, 32
          %s141 = scalar_lea.vmem [#allocation2], %s140
          %s143 = ssub.s32 512, 512
          %144 = vsyncadd %s138, %s143
          %s145 = smul.addr %s15, 4
          %s146 = smul.addr %s145, 128
          %s147 = scalar_lea.hbm %s0, %s146
          %s148 = sshll.u32 %s141, 4
          %s149 = int_to_ptr.vmem [resolvable:$true] %s148
          %154 = dma.hbm_to_vmem [thread:$0]  %s147, 512, %s149, %s138, 128, 128, 8
        $region28: #{tpu_custom_call.1} parent=23 // pred_fallthru
          _
      $region24: #{tpu_custom_call.1} parent=5 // pred_fallthru
        _
      %p155 = scmp.le.s32.totalorder 1, %s15
      %p156 = scmp.lt.s32.totalorder %s15, 3
      %p157 = pnand %p155, %p156
      %p158 = pneg %p157
      // Predicated region
      $region29: #{tpu_custom_call.1} parent=5 // pred_check
        _
      $region30: #{tpu_custom_call.1} parent=5 // pred_check_branch
        %160 = sbr.rel (%p157) target = $region32
      $region31: #{tpu_custom_call.1} parent=5 // pred_region
        %s161 = ssub.s32 %s15, 1
        %s162 = sand.u32 %s28, 1
        %s163 = scalar_lea.sflag [#allocation3], %s162
        %s164 = sand.u32 %s28, 1
        %s165 = smul.addr %s164, 32
        %s166 = scalar_lea.vmem [#allocation2], %s165
        // Predicated region
        $region33: #{tpu_custom_call.1} parent=31 // pred_check
          %p167 = pneg %p41
        $region34: #{tpu_custom_call.1} parent=31 // pred_check_branch
          %169 = sbr.rel (%p167) target = $region36
        $region35: #{tpu_custom_call.1} parent=31 // pred_region
          %170 = dma.done %s163, 512
        $region36: #{tpu_custom_call.1} parent=31 // pred_fallthru
          _
        %s171 = sand.u32 %s28, 1
        %s172 = scalar_lea.sflag [#allocation3], %s171
        %s173 = sand.u32 %s28, 1
        %s174 = smul.addr %s173, 32
        %s175 = scalar_lea.vmem [#allocation2], %s174
        %p176 = pneg %p41
        %p177 = pneg %p38
        %p178 = pneg %p62
        %p179 = pneg %p59
        %p180 = pneg %p83
        %p181 = pneg %p80
        %p182 = pneg %p109
        %p183 = pneg %p106
        %s184 = sand.u32 %s96, 1
        %s185 = scalar_lea.sflag [#allocation4], %s184
        %s186 = sand.u32 %s96, 1
        %s187 = smul.addr %s186, 32
        %s188 = scalar_lea.vmem [#allocation5], %s187
        %v189 = vld [vmem:[%s166] sm:$0xff]
        %v190 = vld [vmem:[%s166 + $0x8] sm:$0xff]
        %v191 = vld [vmem:[%s166 + $0x10] sm:$0xff]
        %v192 = vld [vmem:[%s166 + $0x18] sm:$0xff]
        %vm193 = vcmask 523264
        %v194 = vsel %vm193, %v189, 0.0
        %195 = vadd.xlane.f32.xlu0 %v194
        %v196 = vpop.xlane.xlu0 %195
        %v197 = vsel %vm193, %v190, 0.0
        %198 = vadd.xlane.f32.xlu0 %v197
        %v199 = vpop.xlane.xlu0 %198
        %v200 = vsel %vm193, %v191, 0.0
        %201 = vadd.xlane.f32.xlu0 %v200
        %v202 = vpop.xlane.xlu0 %201
        %v203 = vsel %vm193, %v192, 0.0
        %204 = vadd.xlane.f32.xlu0 %v203
        %v205 = vpop.xlane.xlu0 %204
        %v206 = vmul.f32 %v196, 0.015625
        %v207 = vmul.f32 %v199, 0.015625
        %v208 = vmul.f32 %v202, 0.015625
        %v209 = vmul.f32 %v205, 0.015625
        %v210 = vsel %vm193, %v189, -inf
        %211 = vmax.xlane.f32.xlu0 %v210
        %v212 = vpop.xlane.xlu0 %211
        %v213 = vsel %vm193, %v190, -inf
        %214 = vmax.xlane.f32.xlu0 %v213
        %v215 = vpop.xlane.xlu0 %214
        %v216 = vsel %vm193, %v191, -inf
        %217 = vmax.xlane.f32.xlu0 %v216
        %v218 = vpop.xlane.xlu0 %217
        %v219 = vsel %vm193, %v192, -inf
        %220 = vmax.xlane.f32.xlu0 %v219
        %v221 = vpop.xlane.xlu0 %220
        %v222 = vld [vmem:[%s1] sm:$0x3]
        %v223 = vld [vmem:[%s2] sm:$0xff]
        %v224 = vld [vmem:[%s2 + $0x8] sm:$0xff]
        %v225 = vld [vmem:[%s2 + $0x10] sm:$0xff]
        %v226 = vld [vmem:[%s2 + $0x18] sm:$0xff]
        %v227 = vlaneseq
        %v228 = vand.u32 %v227, 127
        %vm229 = vcmp.eq.s32.totalorder %v228, 0
        %v230 = vsel %vm229, %v206, %v212
        %v231 = vsel %vm229, %v207, %v215
        %v232 = vsel %vm229, %v208, %v218
        %v233 = vsel %vm229, %v209, %v221
        %vm234 = vcmask 261120
        %v236 = vsel %vm234, %v222, 0
        %238 = vmatprep.subr.mxu0 0.0
        %239 = vmatpush1.msra.mxu0 0.0
        %240 = vmatprep.subr.mxu0 0.0
        %241 = vmatpush1.msra.mxu0 0.0
        %242 = vmatprep.subr.mxu0 0.0
        %243 = vmatpush1.msra.mxu0 0.0
        %244 = vmatprep.subr.mxu0 0.0
        %245 = vmatpush1.msra.mxu0 0.0
        %246 = vmatprep.subr.mxu0 0.0
        %247 = vmatpush1.msra.mxu0 0.0
        %248 = vmatprep.subr.mxu0 0.0
        %249 = vmatpush1.msra.mxu0 0.0
        %250 = vmatprep.subr.mxu0 0.0
        %251 = vmatpush1.msra.mxu0 0.0
        %252 = vmatprep.subr.mxu0 0.0
        %253 = vmatpush1.msra.mxu0 0.0
        %254 = vmatprep.subr.mxu0 0.0
        %255 = vmatpush1.msra.mxu0 0.0
        %256 = vmatprep.subr.mxu0 0.0
        %257 = vmatpush1.msra.mxu0 0.0
        %258 = vmatprep.subr.mxu0 0.0
        %259 = vmatpush1.msra.mxu0 0.0
        %260 = vmatprep.subr.mxu0 0.0
        %261 = vmatpush1.msra.mxu0 0.0
        %262 = vmatprep.subr.mxu0 0.0
        %263 = vmatpush1.msra.mxu0 %v233
        %264 = vmatprep.subr.mxu0 0.0
        %265 = vmatpush1.msra.mxu0 %v232
        %266 = vmatprep.subr.mxu0 0.0
        %267 = vmatpush1.msra.mxu0 %v231
        %268 = vmatprep.subr.mxu0 0.0
        %269 = vmatpush1.msra.mxu0 %v230
        %270 = vmatprep.subr.mxu0 0.0
        %271 = vmatpush2.msra.mxu0 0.0
        %272 = vmatprep.subr.mxu0 0.0
        %273 = vmatpush2.msra.mxu0 0.0
        %274 = vmatprep.subr.mxu0 0.0
        %275 = vmatpush2.msra.mxu0 0.0
        %276 = vmatprep.subr.mxu0 0.0
        %277 = vmatpush2.msra.mxu0 0.0
        %278 = vmatprep.subr.mxu0 0.0
        %279 = vmatpush2.msra.mxu0 0.0
        %280 = vmatprep.subr.mxu0 0.0
        %281 = vmatpush2.msra.mxu0 0.0
        %282 = vmatprep.subr.mxu0 0.0
        %283 = vmatpush2.msra.mxu0 0.0
        %284 = vmatprep.subr.mxu0 0.0
        %285 = vmatpush2.msra.mxu0 0.0
        %286 = vmatprep.subr.mxu0 0.0
        %287 = vmatpush2.msra.mxu0 0.0
        %288 = vmatprep.subr.mxu0 0.0
        %289 = vmatpush2.msra.mxu0 0.0
        %290 = vmatprep.subr.mxu0 0.0
        %291 = vmatpush2.msra.mxu0 0.0
        %292 = vmatprep.subr.mxu0 0.0
        %293 = vmatpush2.msra.mxu0 0.0
        %294 = vmatprep.subr.mxu0 0.0
        %295 = vmatpush2.msra.mxu0 0.0
        %296 = vmatprep.subr.mxu0 0.0
        %297 = vmatpush2.msra.mxu0 0.0
        %298 = vmatprep.subr.mxu0 0.0
        %299 = vmatpush2.msra.mxu0 0.0
        %300 = vmatprep.subr.mxu0 0.0
        %301 = vmatpush2.msra.mxu0 0.0
        %302 = vmatprep.mubr.f32.mxu0 0.0
        %303 = vmatmul.mubr.f32.gmra.mxu0 %v236
        %v304 = vpop.f32.mrf.mxu0
        %v305 = vadd.f32 0.0, %v304
        %v306 = vpop.f32.mrf.mxu0
        %307 = vdwg.mxu0
        %v308 = vmax.f32 %v305, 0.0
        %vm309 = vcmask 15360
        %v311 = vsel %vm309, %v223, 0
        %v314 = vsel %vm309, %v224, 0
        %v317 = vsel %vm309, %v225, 0
        %v320 = vsel %vm309, %v226, 0
        %vm322 = vcmask 1041408
        %v324 = vsel %vm322, %v308, 0
        %326 = vmatprep.subr.mxu0 0.0
        %327 = vmatpush1.msra.mxu0 0.0
        %328 = vmatprep.subr.mxu0 0.0
        %329 = vmatpush1.msra.mxu0 0.0
        %330 = vmatprep.subr.mxu0 0.0
        %331 = vmatpush1.msra.mxu0 0.0
        %332 = vmatprep.subr.mxu0 0.0
        %333 = vmatpush1.msra.mxu0 0.0
        %334 = vmatprep.subr.mxu0 0.0
        %335 = vmatpush1.msra.mxu0 0.0
        %336 = vmatprep.subr.mxu0 0.0
        %337 = vmatpush1.msra.mxu0 0.0
        %338 = vmatprep.subr.mxu0 0.0
        %339 = vmatpush1.msra.mxu0 0.0
        %340 = vmatprep.subr.mxu0 0.0
        %341 = vmatpush1.msra.mxu0 0.0
        %342 = vmatprep.subr.mxu0 0.0
        %343 = vmatpush1.msra.mxu0 0.0
        %344 = vmatprep.subr.mxu0 0.0
        %345 = vmatpush1.msra.mxu0 0.0
        %346 = vmatprep.subr.mxu0 0.0
        %347 = vmatpush1.msra.mxu0 0.0
        %348 = vmatprep.subr.mxu0 0.0
        %349 = vmatpush1.msra.mxu0 0.0
        %350 = vmatprep.subr.mxu0 0.0
        %351 = vmatpush1.msra.mxu0 0.0
        %352 = vmatprep.subr.mxu0 0.0
        %353 = vmatpush1.msra.mxu0 0.0
        %354 = vmatprep.subr.mxu0 0.0
        %355 = vmatpush1.msra.mxu0 0.0
        %356 = vmatprep.subr.mxu0 0.0
        %357 = vmatpush1.msra.mxu0 %v324
        %358 = vmatprep.subr.mxu0 0.0
        %359 = vmatpush2.msra.mxu0 0.0
        %360 = vmatprep.subr.mxu0 0.0
        %361 = vmatpush2.msra.mxu0 0.0
        %362 = vmatprep.subr.mxu0 0.0
        %363 = vmatpush2.msra.mxu0 0.0
        %364 = vmatprep.subr.mxu0 0.0
        %365 = vmatpush2.msra.mxu0 0.0
        %366 = vmatprep.subr.mxu0 0.0
        %367 = vmatpush2.msra.mxu0 0.0
        %368 = vmatprep.subr.mxu0 0.0
        %369 = vmatpush2.msra.mxu0 0.0
        %370 = vmatprep.subr.mxu0 0.0
        %371 = vmatpush2.msra.mxu0 0.0
        %372 = vmatprep.subr.mxu0 0.0
        %373 = vmatpush2.msra.mxu0 0.0
        %374 = vmatprep.subr.mxu0 0.0
        %375 = vmatpush2.msra.mxu0 0.0
        %376 = vmatprep.subr.mxu0 0.0
        %377 = vmatpush2.msra.mxu0 0.0
        %378 = vmatprep.subr.mxu0 0.0
        %379 = vmatpush2.msra.mxu0 0.0
        %380 = vmatprep.subr.mxu0 0.0
        %381 = vmatpush2.msra.mxu0 0.0
        %382 = vmatprep.subr.mxu0 0.0
        %383 = vmatpush2.msra.mxu0 0.0
        %384 = vmatprep.subr.mxu0 0.0
        %385 = vmatpush2.msra.mxu0 0.0
        %386 = vmatprep.subr.mxu0 0.0
        %387 = vmatpush2.msra.mxu0 0.0
        %388 = vmatprep.subr.mxu0 0.0
        %389 = vmatpush2.msra.mxu0 0.0
        %390 = vmatprep.mubr.f32.mxu0 0.0
        %391 = vmatmul.mubr.f32.gmra.mxu0 %v311
        %v392 = vpop.f32.mrf.mxu0
        %v393 = vadd.f32 0.0, %v392
        %v394 = vpop.f32.mrf.mxu0
        %395 = vmatprep.mubr.f32.mxu0 0.0
        %396 = vmatmul.mubr.f32.gmra.mxu0 %v314
        %v397 = vpop.f32.mrf.mxu0
        %v398 = vadd.f32 0.0, %v397
        %v399 = vpop.f32.mrf.mxu0
        %400 = vmatprep.mubr.f32.mxu0 0.0
        %401 = vmatmul.mubr.f32.gmra.mxu0 %v317
        %v402 = vpop.f32.mrf.mxu0
        %v403 = vadd.f32 0.0, %v402
        %v404 = vpop.f32.mrf.mxu0
        %405 = vmatprep.mubr.f32.mxu0 0.0
        %406 = vmatmul.mubr.f32.gmra.mxu0 %v320
        %v407 = vpop.f32.mrf.mxu0
        %v408 = vadd.f32 0.0, %v407
        %v409 = vpop.f32.mrf.mxu0
        %410 = vdwg.mxu0
        %v411 = vxor.u32 %v393, 2147483648
        %v412 = vxor.u32 %v398, 2147483648
        %v413 = vxor.u32 %v403, 2147483648
        %v414 = vxor.u32 %v408, 2147483648
        %v415 = vmul.f32 %v411, 1.442695
        %v416 = vpow.pop %v415
        %v417 = vmul.f32 %v412, 1.442695
        %v418 = vpow.pop %v417
        %v419 = vmul.f32 %v413, 1.442695
        %v420 = vpow.pop %v419
        %v421 = vmul.f32 %v414, 1.442695
        %v422 = vpow.pop %v421
        %v423 = vadd.f32 %v416, 1.0
        %v424 = vadd.f32 %v418, 1.0
        %v425 = vadd.f32 %v420, 1.0
        %v426 = vadd.f32 %v422, 1.0
        %v427 = vrcp.pop %v423
        %v428 = vmul.f32 1.0, %v427
        %v429 = vrcp.pop %v424
        %v430 = vmul.f32 1.0, %v429
        %v431 = vrcp.pop %v425
        %v432 = vmul.f32 1.0, %v431
        %v433 = vrcp.pop %v426
        %v434 = vmul.f32 1.0, %v433
        %v435 = vsel %vm309, %v428, 0.0
        %436 = vadd.xlane.f32.xlu0 %v435
        %v437 = vpop.xlane.xlu0 %436
        %v438 = vsel %vm309, %v430, 0.0
        %439 = vadd.xlane.f32.xlu0 %v438
        %v440 = vpop.xlane.xlu0 %439
        %v441 = vsel %vm309, %v432, 0.0
        %442 = vadd.xlane.f32.xlu0 %v441
        %v443 = vpop.xlane.xlu0 %442
        %v444 = vsel %vm309, %v434, 0.0
        %445 = vadd.xlane.f32.xlu0 %v444
        %v446 = vpop.xlane.xlu0 %445
        %v447 = vmul.f32 %v189, %v437
        %v448 = vmul.f32 %v190, %v440
        %v449 = vmul.f32 %v191, %v443
        %v450 = vmul.f32 %v192, %v446
        %451 = vst.msk [vmem:[%s188] sm:$0xff] %vm193, %v447
        %452 = vst.msk [vmem:[%s188 + $0x8] sm:$0xff] %vm193, %v448
        %453 = vst.msk [vmem:[%s188 + $0x10] sm:$0xff] %vm193, %v449
        %454 = vst.msk [vmem:[%s188 + $0x18] sm:$0xff] %vm193, %v450
        %s455 = sand.u32 %s96, 1
        %s456 = scalar_lea.sflag [#allocation4], %s455
        %s457 = sand.u32 %s96, 1
        %s458 = smul.addr %s457, 32
        %s459 = scalar_lea.vmem [#allocation5], %s458
        // Predicated region
        $region37: #{tpu_custom_call.1} parent=31 // pred_check
          %p460 = pneg %p106
        $region38: #{tpu_custom_call.1} parent=31 // pred_check_branch
          %462 = sbr.rel (%p460) target = $region40
        $region39: #{tpu_custom_call.1} parent=31 // pred_region
          %s464 = ssub.s32 512, 512
          %465 = vsyncadd %s456, %s464
          %s466 = smul.addr %s20, 4
          %s467 = smul.addr %s466, 128
          %s468 = scalar_lea.hbm %s3, %s467
          %s469 = sshll.u32 %s459, 4
          %s470 = int_to_ptr.vmem [resolvable:$true] %s469
          %475 = dma.vmem_to_hbm [thread:$0]  %s470, 512, %s468, %s456, 128, 128, 8
        $region40: #{tpu_custom_call.1} parent=31 // pred_fallthru
          _
      $region32: #{tpu_custom_call.1} parent=5 // pred_fallthru
        _
      %p476 = scmp.le.s32.totalorder 2, %s15
      // Predicated region
      $region41: #{tpu_custom_call.1} parent=5 // pred_check
        %p477 = pneg %p476
      $region42: #{tpu_custom_call.1} parent=5 // pred_check_branch
        %479 = sbr.rel (%p477) target = $region44
      $region43: #{tpu_custom_call.1} parent=5 // pred_region
        %s480 = ssub.s32 %s15, 2
        // Predicated region
        $region45: #{tpu_custom_call.1} parent=43 // pred_check
          %p481 = pneg %p112
        $region46: #{tpu_custom_call.1} parent=43 // pred_check_branch
          %483 = sbr.rel (%p481) target = $region48
        $region47: #{tpu_custom_call.1} parent=43 // pred_region
          %s484 = sand.u32 %s97, 1
          %s485 = scalar_lea.sflag [#allocation4], %s484
          %s486 = sand.u32 %s97, 1
          %s487 = smul.addr %s486, 32
          %s488 = scalar_lea.vmem [#allocation5], %s487
          %489 = dma.done %s485, 512
        $region48: #{tpu_custom_call.1} parent=43 // pred_fallthru
          _
      $region44: #{tpu_custom_call.1} parent=5 // pred_fallthru
        _
    $region6: #{tpu_custom_call.1} parent=1 // loop_footer
      %s19 = sadd.s32 1, %s15
    $region7: #{tpu_custom_call.1} parent=1 // loop_footer_branch
      %14 = sbr.rel target = $region3
    $region8: #{tpu_custom_call.1} parent=1 // loop_exit
      _
    %490 = vsyncpa [#allocation3], 1
    %s491 = scalar_lea.sflag [#allocation3], 1
    %492 = vsyncpa %s491, 1
    %493 = vsyncpa [#allocation4], 1
    %s494 = scalar_lea.sflag [#allocation4], 1
    %495 = vsyncpa %s494, 1

</llo_original>
